<compile_context>
chip_gen: v6e
topology: v6e:2x2x1
jax: 0.10.0
libtpu: 0.0.40
codegen_flags: <defaults>
</compile_context>

<pallas_src>
import numpy as np
import jax
import jax.numpy as jnp
from jax.experimental import pallas as pl
from jax.experimental.pallas import tpu as pltpu


# ---------------------------------------------------------------------------
# config (synthetic, consistent with the PyTorch module's forward pass)
# ---------------------------------------------------------------------------
class config:
    batch_size = 2
    num_inp_channels = 1
    num_conv_horiz_channels = 4
    conv_horiz_filter_size = 3
    num_conv_vert_channels = 8
    conv_vert_filter_size = 3
    inp_height = 16          # spectrogram frames
    inp_width = 5            # width collapses to 1 after the two valid convs
    num_enc_out_features = inp_height - conv_horiz_filter_size - conv_vert_filter_size + 2  # 12
    num_fcc_in_features = num_conv_vert_channels * num_enc_out_features * 1                 # 96
    num_fcc_out_features = 32


HEADS = ("baby_cry", "dog", "siren", "speech", "others")   # torch.cat order in forward()
NUM_HEADS = len(HEADS)
HEAD_PAD = 128   # lane-aligned per-head tile (96 real inputs / 80 real outputs, zero padded)


# ---------------------------------------------------------------------------
# Fused Pallas kernel: 3 matmul stages + bias + ReLU epilogues, all operands VMEM-resident
# ---------------------------------------------------------------------------
def _fused_autoencoder_kernel(x_ref, a_ref, ab_ref, wh_ref, bh_ref, c_ref, cb_ref, o_ref):
    f32, bf16 = jnp.float32, jnp.bfloat16

    # stage A: enc_conv1 . enc_conv2 . shared_linear (pre-composed), then the shared ReLU
    s = jnp.dot(x_ref[...], a_ref[...], preferred_element_type=f32) + ab_ref[...]
    s = jnp.maximum(s, 0.0)

    # stage B: the 5 per-head FC layers batched along the lane axis (each padded to 128), + ReLU
    h = jnp.dot(s.astype(bf16), wh_ref[...], preferred_element_type=f32) + bh_ref[...]
    h = jnp.maximum(h, 0.0).astype(bf16)

    # stage C: block-diagonal per-head (deconv1 . deconv2) as 5 stacked 128x128 blocks,
    # unrolled over heads with 128-lane-aligned slices; final ReLU fused into the store.
    for i in range(NUM_HEADS):
        hk = h[:, i * HEAD_PAD:(i + 1) * HEAD_PAD]
        y = jnp.dot(hk, c_ref[i], preferred_element_type=f32)
        y = y + cb_ref[:, i * HEAD_PAD:(i + 1) * HEAD_PAD]
        o_ref[:, i * HEAD_PAD:(i + 1) * HEAD_PAD] = jnp.maximum(y, 0.0)


def autoencoder_forward(weights, inp):
    c = config
    B = inp.shape[0]
    per_head_out = c.num_inp_channels * c.inp_height * c.inp_width   # 80

    x_flat = inp.reshape(B, -1).astype(jnp.float32)   # NCHW C-order flatten -> (B, 80)

    operands = (
        x_flat,
        weights["A"], weights["a"],
        weights["Wh"], weights["bh"],
        weights["C"], weights["c"],
    )
    vmem_spec = pl.BlockSpec(memory_space=pltpu.MemorySpace.VMEM)

    out_pad = pl.pallas_call(
        _fused_autoencoder_kernel,
        out_shape=jax.ShapeDtypeStruct((B, NUM_HEADS * HEAD_PAD), jnp.float32),
        in_specs=[vmem_spec] * len(operands),
        out_specs=vmem_spec,
    )(*operands)

    # drop the per-head lane padding, then reshape to (B, 5*C, H, W) == torch.cat(dim=1)
    out = out_pad.reshape(B, NUM_HEADS, HEAD_PAD)[:, :, :per_head_out]
    return out.reshape(B, NUM_HEADS * c.num_inp_channels, c.inp_height, c.inp_width)


# ---------------------------------------------------------------------------
# Weight prep (one time, off the inference path): conv / deconv -> dense linear
# operators over flattened NCHW activations, composed + head-batched in float64.
# ---------------------------------------------------------------------------
def conv2d_as_matrix(w, b, H, W):
    """nn.Conv2d (stride 1, valid) as: out_flat = x_flat @ M + bias_exp.
    w: (Cout, Cin, kh, kw); flattening is C-order (c, h, w)."""
    w = np.asarray(w, np.float64)
    b = np.asarray(b, np.float64)
    Cout, Cin, kh, kw = w.shape
    Ho, Wo = H - kh + 1, W - kw + 1
    M = np.zeros((Cin * H * W, Cout * Ho * Wo), np.float64)
    oi, oj = np.meshgrid(np.arange(Ho), np.arange(Wo), indexing="ij")
    out_sp = (oi * Wo + oj).ravel()
    for di in range(kh):
        for dj in range(kw):
            in_sp = ((oi + di) * W + (oj + dj)).ravel()
            for co in range(Cout):
                for ci in range(Cin):
                    M[ci * H * W + in_sp, co * Ho * Wo + out_sp] += w[co, ci, di, dj]
    b_exp = np.repeat(b, Ho * Wo)
    return M, b_exp, (Ho, Wo)


def conv_transpose2d_as_matrix(w, b, H, W):
    """nn.ConvTranspose2d (stride 1, no padding) as: out_flat = x_flat @ M + bias_exp.
    w: (Cin, Cout, kh, kw); flattening is C-order (c, h, w)."""
    w = np.asarray(w, np.float64)
    b = np.asarray(b, np.float64)
    Cin, Cout, kh, kw = w.shape
    Ho, Wo = H + kh - 1, W + kw - 1
    M = np.zeros((Cin * H * W, Cout * Ho * Wo), np.float64)
    ii, jj = np.meshgrid(np.arange(H), np.arange(W), indexing="ij")
    in_sp = (ii * W + jj).ravel()
    for di in range(kh):
        for dj in range(kw):
            out_sp = ((ii + di) * Wo + (jj + dj)).ravel()
            for ci in range(Cin):
                for co in range(Cout):
                    M[ci * H * W + in_sp, co * Ho * Wo + out_sp] += w[ci, co, di, dj]
    b_exp = np.repeat(b, Ho * Wo)
    return M, b_exp, (Ho, Wo)


def prepare_inference_weights(raw):
    c = config
    H, W = c.inp_height, c.inp_width
    head_in = c.num_fcc_in_features                        # 96
    head_out = c.num_inp_channels * H * W                  # 80

    # --- stage A: enc_conv1 . enc_conv2 . shared_linear (no nonlinearity inside) ---
    M1, b1, (H1, W1) = conv2d_as_matrix(raw["enc1_w"], raw["enc1_b"], H, W)
    M2, b2, (H2, W2) = conv2d_as_matrix(raw["enc2_w"], raw["enc2_b"], H1, W1)
    assert (H2, W2) == (c.num_enc_out_features, 1)
    Ws = np.asarray(raw["shared_w"], np.float64).T          # torch Linear: x @ W.T
    bs = np.asarray(raw["shared_b"], np.float64)
    A = M1 @ M2 @ Ws                                        # (80, 32)
    a_vec = (b1 @ M2 + b2) @ Ws + bs                        # (32,)

    # --- stage B: per-head FC layers, each zero-padded 96 -> 128 and lane-concatenated ---
    Wh = np.zeros((c.num_fcc_out_features, NUM_HEADS * HEAD_PAD), np.float64)   # (32, 640)
    bh = np.zeros((NUM_HEADS * HEAD_PAD,), np.float64)
    for i, hd in enumerate(HEADS):
        Wh[:, i * HEAD_PAD:i * HEAD_PAD + head_in] = np.asarray(raw[f"fcl_{hd}_w"], np.float64).T
        bh[i * HEAD_PAD:i * HEAD_PAD + head_in] = np.asarray(raw[f"fcl_{hd}_b"], np.float64)

    # --- stage C: per-head deconv1 . deconv2 composed; STACKED blocks (no dense block-diag) ---
    Cblk = np.zeros((NUM_HEADS, HEAD_PAD, HEAD_PAD), np.float64)                # (5, 128, 128)
    cvec = np.zeros((NUM_HEADS * HEAD_PAD,), np.float64)
    for i, hd in enumerate(HEADS):
        Md1, bd1, (Hd1, Wd1) = conv_transpose2d_as_matrix(
            raw[f"dec1_{hd}_w"], raw[f"dec1_{hd}_b"], c.num_enc_out_features, 1)
        Md2, bd2, (Hd2, Wd2) = conv_transpose2d_as_matrix(
            raw[f"dec2_{hd}_w"], raw[f"dec2_{hd}_b"], Hd1, Wd1)
        assert (Hd2, Wd2) == (H, W)
        Cblk[i, :head_in, :head_out] = Md1 @ Md2            # (96, 80) real block
        cvec[i * HEAD_PAD:i * HEAD_PAD + head_out] = bd1 @ Md2 + bd2

    j32 = lambda v: jnp.asarray(np.asarray(v, np.float32))
    jbf = lambda v: jnp.asarray(np.asarray(v, np.float32)).astype(jnp.bfloat16)
    return {
        "A": j32(A),      "a": j32(a_vec.reshape(1, -1)),
        "Wh": jbf(Wh),    "bh": j32(bh.reshape(1, -1)),
        "C": jbf(Cblk),   "c": j32(cvec.reshape(1, -1)),
    }


# ---------------------------------------------------------------------------
# Raw parameter construction (deterministic, PyTorch-like uniform init)
# ---------------------------------------------------------------------------
def _init_param(key, shape, fan_in):
    bound = 1.0 / np.sqrt(fan_in)
    return jax.random.uniform(key, shape, jnp.float32, -bound, bound)


def make_raw_params(key):
    c = config
    ks = iter(jax.random.split(key, 64))
    p = {}

    fan = c.num_inp_channels * c.conv_horiz_filter_size ** 2
    p["enc1_w"] = _init_param(next(ks), (c.num_conv_horiz_channels, c.num_inp_channels,
                                         c.conv_horiz_filter_size, c.conv_horiz_filter_size), fan)
    p["enc1_b"] = _init_param(next(ks), (c.num_conv_horiz_channels,), fan)
    fan = c.num_conv_horiz_channels * c.conv_vert_filter_size ** 2
    p["enc2_w"] = _init_param(next(ks), (c.num_conv_vert_channels, c.num_conv_horiz_channels,
                                         c.conv_vert_filter_size, c.conv_vert_filter_size), fan)
    p["enc2_b"] = _init_param(next(ks), (c.num_conv_vert_channels,), fan)

    p["shared_w"] = _init_param(next(ks), (c.num_fcc_out_features, c.num_fcc_in_features),
                                c.num_fcc_in_features)
    p["shared_b"] = _init_param(next(ks), (c.num_fcc_out_features,), c.num_fcc_in_features)

    for head in HEADS:
        p[f"fcl_{head}_w"] = _init_param(next(ks), (c.num_fcc_in_features, c.num_fcc_out_features),
                                         c.num_fcc_out_features)
        p[f"fcl_{head}_b"] = _init_param(next(ks), (c.num_fcc_in_features,), c.num_fcc_out_features)
        fan = c.num_conv_vert_channels * c.conv_vert_filter_size ** 2
        p[f"dec1_{head}_w"] = _init_param(next(ks), (c.num_conv_vert_channels, c.num_conv_horiz_channels,
                                                     c.conv_vert_filter_size, c.conv_vert_filter_size), fan)
        p[f"dec1_{head}_b"] = _init_param(next(ks), (c.num_conv_horiz_channels,), fan)
        fan = c.num_conv_horiz_channels * c.conv_horiz_filter_size ** 2
        p[f"dec2_{head}_w"] = _init_param(next(ks), (c.num_conv_horiz_channels, c.num_inp_channels,
                                                     c.conv_horiz_filter_size, c.conv_horiz_filter_size), fan)
        p[f"dec2_{head}_b"] = _init_param(next(ks), (c.num_inp_channels,), fan)
    return p


# ---------------------------------------------------------------------------
# Pure-NumPy layer-by-layer reference of the original PyTorch module
# ---------------------------------------------------------------------------
def np_conv2d(x, w, b):
    B, Cin, H, W = x.shape
    Cout, _, kh, kw = w.shape
    Ho, Wo = H - kh + 1, W - kw + 1
    out = np.zeros((B, Cout, Ho, Wo), np.float32)
    for i in range(Ho):
        for j in range(Wo):
            out[:, :, i, j] = np.einsum("bcij,ocij->bo", x[:, :, i:i + kh, j:j + kw], w)
    return out + b.reshape(1, Cout, 1, 1)


def np_conv_transpose2d(x, w, b):
    B, Cin, H, W = x.shape
    _, Cout, kh, kw = w.shape
    Ho, Wo = H + kh - 1, W + kw - 1
    out = np.zeros((B, Cout, Ho, Wo), np.float32)
    for i in range(H):
        for j in range(W):
            out[:, :, i:i + kh, j:j + kw] += np.einsum("bc,coij->boij", x[:, :, i, j], w)
    return out + b.reshape(1, Cout, 1, 1)


def reference_forward_np(raw, x):
    c = config
    g = lambda k: np.asarray(raw[k], np.float32)
    h = np_conv2d(np.asarray(x, np.float32), g("enc1_w"), g("enc1_b"))
    h = np_conv2d(h, g("enc2_w"), g("enc2_b"))
    h = h.reshape(c.batch_size, -1)
    shared = np.maximum(h @ g("shared_w").T + g("shared_b"), 0.0)
    outs = []
    for head in HEADS:
        d = np.maximum(shared @ g(f"fcl_{head}_w").T + g(f"fcl_{head}_b"), 0.0)
        d = d.reshape(-1, c.num_conv_vert_channels, c.num_enc_out_features, 1)
        d = np_conv_transpose2d(d, g(f"dec1_{head}_w"), g(f"dec1_{head}_b"))
        d = np_conv_transpose2d(d, g(f"dec2_{head}_w"), g(f"dec2_{head}_b"))
        outs.append(d)
    return np.maximum(np.concatenate(outs, axis=1), 0.0)


# ---------------------------------------------------------------------------
if __name__ == "__main__":
    key = jax.random.PRNGKey(0)
    pkey, xkey = jax.random.split(key)
    raw = make_raw_params(pkey)
    weights = prepare_inference_weights(raw)

    x = jax.random.normal(
        xkey,
        (config.batch_size, config.num_inp_channels, config.inp_height, config.inp_width),
        jnp.float32,
    )

    fwd = jax.jit(autoencoder_forward)
    out = jax.block_until_ready(fwd(weights, x))

    expected_shape = (config.batch_size, NUM_HEADS * config.num_inp_channels,
                      config.inp_height, config.inp_width)
    assert out.shape == expected_shape, (out.shape, expected_shape)
    assert bool(jnp.all(out >= 0.0)), "final ReLU violated"

    # End-to-end check against the layer-by-layer f32 reference of the original module.
    # Tolerance accounts for bf16 weight storage + default-precision (bf16) MXU passes;
    # observed end-to-end error at these activation scales is ~1e-3.
    ref = reference_forward_np(raw, np.asarray(x))
    np.testing.assert_allclose(np.asarray(out), ref, rtol=2e-2, atol=2e-2)

    print("KERNEL_OK")
</pallas_src>

<mosaic_0001>
module attributes {stable_mosaic.version = 11 : i64} {
  func.func @_fused_autoencoder_kernel(%arg0: memref<2x80xf32, #tpu.memory_space<vmem>>, %arg1: memref<80x32xf32, #tpu.memory_space<vmem>>, %arg2: memref<1x32xf32, #tpu.memory_space<vmem>>, %arg3: memref<32x640xbf16, #tpu.memory_space<vmem>>, %arg4: memref<1x640xf32, #tpu.memory_space<vmem>>, %arg5: memref<5x128x128xbf16, #tpu.memory_space<vmem>>, %arg6: memref<1x640xf32, #tpu.memory_space<vmem>>, %arg7: memref<2x640xf32, #tpu.memory_space<vmem>>) attributes {dimension_semantics = [], scalar_prefetch = 0 : i64, scratch_operands = 0 : i64, tpu.core_type = #tpu.core_type<tc>} {
    %c0 = arith.constant 0 : index
    %c0_0 = arith.constant 0 : index
    %0 = vector.load %arg0[%c0, %c0_0] : memref<2x80xf32, #tpu.memory_space<vmem>>, vector<2x80xf32>
    %c0_1 = arith.constant 0 : index
    %c0_2 = arith.constant 0 : index
    %1 = vector.load %arg1[%c0_1, %c0_2] : memref<80x32xf32, #tpu.memory_space<vmem>>, vector<80x32xf32>
    %cst = arith.constant dense<0.000000e+00> : vector<2x32xf32>
    %2 = tpu.matmul %0, %1, %cst {dimension_numbers = #tpu.dot_dimension_numbers<[1], [0], [0], [1], [0, 0, 1, 1], [], []>} : vector<2x80xf32>, vector<80x32xf32>, vector<2x32xf32> -> vector<2x32xf32>
    %c0_3 = arith.constant 0 : index
    %c0_4 = arith.constant 0 : index
    %3 = vector.load %arg2[%c0_3, %c0_4] : memref<1x32xf32, #tpu.memory_space<vmem>>, vector<1x32xf32>
    %4 = vector.broadcast %3 : vector<1x32xf32> to vector<2x32xf32>
    %5 = arith.addf %2, %4 : vector<2x32xf32>
    %cst_5 = arith.constant 0.000000e+00 : f32
    %6 = vector.broadcast %cst_5 : f32 to vector<2x32xf32>
    %7 = arith.maximumf %5, %6 : vector<2x32xf32>
    %8 = arith.truncf %7 : vector<2x32xf32> to vector<2x32xbf16>
    %c0_6 = arith.constant 0 : index
    %c0_7 = arith.constant 0 : index
    %9 = vector.load %arg3[%c0_6, %c0_7] : memref<32x640xbf16, #tpu.memory_space<vmem>>, vector<32x640xbf16>
    %cst_8 = arith.constant dense<0.000000e+00> : vector<2x640xf32>
    %10 = tpu.matmul %8, %9, %cst_8 {dimension_numbers = #tpu.dot_dimension_numbers<[1], [0], [0], [1], [0, 0, 1, 1], [], []>} : vector<2x32xbf16>, vector<32x640xbf16>, vector<2x640xf32> -> vector<2x640xf32>
    %c0_9 = arith.constant 0 : index
    %c0_10 = arith.constant 0 : index
    %11 = vector.load %arg4[%c0_9, %c0_10] : memref<1x640xf32, #tpu.memory_space<vmem>>, vector<1x640xf32>
    %12 = vector.broadcast %11 : vector<1x640xf32> to vector<2x640xf32>
    %13 = arith.addf %10, %12 : vector<2x640xf32>
    %cst_11 = arith.constant 0.000000e+00 : f32
    %14 = vector.broadcast %cst_11 : f32 to vector<2x640xf32>
    %15 = arith.maximumf %13, %14 : vector<2x640xf32>
    %16 = arith.truncf %15 : vector<2x640xf32> to vector<2x640xbf16>
    %17 = vector.extract_strided_slice %16 {offsets = [0, 0], sizes = [2, 128], strides = [1, 1]} : vector<2x640xbf16> to vector<2x128xbf16>
    %c0_12 = arith.constant 0 : index
    %c0_13 = arith.constant 0 : index
    %c0_14 = arith.constant 0 : index
    %18 = vector.load %arg5[%c0_12, %c0_13, %c0_14] : memref<5x128x128xbf16, #tpu.memory_space<vmem>>, vector<1x128x128xbf16>
    %19 = vector.shape_cast %18 : vector<1x128x128xbf16> to vector<128x128xbf16>
    %cst_15 = arith.constant dense<0.000000e+00> : vector<2x128xf32>
    %20 = tpu.matmul %17, %19, %cst_15 {dimension_numbers = #tpu.dot_dimension_numbers<[1], [0], [0], [1], [0, 0, 1, 1], [], []>} : vector<2x128xbf16>, vector<128x128xbf16>, vector<2x128xf32> -> vector<2x128xf32>
    %c0_16 = arith.constant 0 : index
    %c0_17 = arith.constant 0 : index
    %21 = vector.load %arg6[%c0_16, %c0_17] : memref<1x640xf32, #tpu.memory_space<vmem>>, vector<1x128xf32>
    %22 = vector.broadcast %21 : vector<1x128xf32> to vector<2x128xf32>
    %23 = arith.addf %20, %22 : vector<2x128xf32>
    %cst_18 = arith.constant 0.000000e+00 : f32
    %24 = vector.broadcast %cst_18 : f32 to vector<2x128xf32>
    %25 = arith.maximumf %23, %24 : vector<2x128xf32>
    %c0_19 = arith.constant 0 : index
    %c0_20 = arith.constant 0 : index
    %26 = vector.load %arg7[%c0_19, %c0_20] : memref<2x640xf32, #tpu.memory_space<vmem>>, vector<2x128xf32>
    tpu.vector_store %arg7[%c0_19, %c0_20], %25 {strides = array<i32>} : memref<2x640xf32, #tpu.memory_space<vmem>>, vector<2x128xf32>,
    %27 = vector.extract_strided_slice %16 {offsets = [0, 128], sizes = [2, 128], strides = [1, 1]} : vector<2x640xbf16> to vector<2x128xbf16>
    %c1 = arith.constant 1 : index
    %c0_21 = arith.constant 0 : index
    %c0_22 = arith.constant 0 : index
    %28 = vector.load %arg5[%c1, %c0_21, %c0_22] : memref<5x128x128xbf16, #tpu.memory_space<vmem>>, vector<1x128x128xbf16>
    %29 = vector.shape_cast %28 : vector<1x128x128xbf16> to vector<128x128xbf16>
    %cst_23 = arith.constant dense<0.000000e+00> : vector<2x128xf32>
    %30 = tpu.matmul %27, %29, %cst_23 {dimension_numbers = #tpu.dot_dimension_numbers<[1], [0], [0], [1], [0, 0, 1, 1], [], []>} : vector<2x128xbf16>, vector<128x128xbf16>, vector<2x128xf32> -> vector<2x128xf32>
    %c0_24 = arith.constant 0 : index
    %c128 = arith.constant 128 : index
    %31 = vector.load %arg6[%c0_24, %c128] : memref<1x640xf32, #tpu.memory_space<vmem>>, vector<1x128xf32>
    %32 = vector.broadcast %31 : vector<1x128xf32> to vector<2x128xf32>
    %33 = arith.addf %30, %32 : vector<2x128xf32>
    %cst_25 = arith.constant 0.000000e+00 : f32
    %34 = vector.broadcast %cst_25 : f32 to vector<2x128xf32>
    %35 = arith.maximumf %33, %34 : vector<2x128xf32>
    %c0_26 = arith.constant 0 : index
    %c128_27 = arith.constant 128 : index
    %36 = vector.load %arg7[%c0_26, %c128_27] : memref<2x640xf32, #tpu.memory_space<vmem>>, vector<2x128xf32>
    tpu.vector_store %arg7[%c0_26, %c128_27], %35 {strides = array<i32>} : memref<2x640xf32, #tpu.memory_space<vmem>>, vector<2x128xf32>,
    %37 = vector.extract_strided_slice %16 {offsets = [0, 256], sizes = [2, 128], strides = [1, 1]} : vector<2x640xbf16> to vector<2x128xbf16>
    %c2 = arith.constant 2 : index
    %c0_28 = arith.constant 0 : index
    %c0_29 = arith.constant 0 : index
    %38 = vector.load %arg5[%c2, %c0_28, %c0_29] : memref<5x128x128xbf16, #tpu.memory_space<vmem>>, vector<1x128x128xbf16>
    %39 = vector.shape_cast %38 : vector<1x128x128xbf16> to vector<128x128xbf16>
    %cst_30 = arith.constant dense<0.000000e+00> : vector<2x128xf32>
    %40 = tpu.matmul %37, %39, %cst_30 {dimension_numbers = #tpu.dot_dimension_numbers<[1], [0], [0], [1], [0, 0, 1, 1], [], []>} : vector<2x128xbf16>, vector<128x128xbf16>, vector<2x128xf32> -> vector<2x128xf32>
    %c0_31 = arith.constant 0 : index
    %c256 = arith.constant 256 : index
    %41 = vector.load %arg6[%c0_31, %c256] : memref<1x640xf32, #tpu.memory_space<vmem>>, vector<1x128xf32>
    %42 = vector.broadcast %41 : vector<1x128xf32> to vector<2x128xf32>
    %43 = arith.addf %40, %42 : vector<2x128xf32>
    %cst_32 = arith.constant 0.000000e+00 : f32
    %44 = vector.broadcast %cst_32 : f32 to vector<2x128xf32>
    %45 = arith.maximumf %43, %44 : vector<2x128xf32>
    %c0_33 = arith.constant 0 : index
    %c256_34 = arith.constant 256 : index
    %46 = vector.load %arg7[%c0_33, %c256_34] : memref<2x640xf32, #tpu.memory_space<vmem>>, vector<2x128xf32>
    tpu.vector_store %arg7[%c0_33, %c256_34], %45 {strides = array<i32>} : memref<2x640xf32, #tpu.memory_space<vmem>>, vector<2x128xf32>,
    %47 = vector.extract_strided_slice %16 {offsets = [0, 384], sizes = [2, 128], strides = [1, 1]} : vector<2x640xbf16> to vector<2x128xbf16>
    %c3 = arith.constant 3 : index
    %c0_35 = arith.constant 0 : index
    %c0_36 = arith.constant 0 : index
    %48 = vector.load %arg5[%c3, %c0_35, %c0_36] : memref<5x128x128xbf16, #tpu.memory_space<vmem>>, vector<1x128x128xbf16>
    %49 = vector.shape_cast %48 : vector<1x128x128xbf16> to vector<128x128xbf16>
    %cst_37 = arith.constant dense<0.000000e+00> : vector<2x128xf32>
    %50 = tpu.matmul %47, %49, %cst_37 {dimension_numbers = #tpu.dot_dimension_numbers<[1], [0], [0], [1], [0, 0, 1, 1], [], []>} : vector<2x128xbf16>, vector<128x128xbf16>, vector<2x128xf32> -> vector<2x128xf32>
    %c0_38 = arith.constant 0 : index
    %c384 = arith.constant 384 : index
    %51 = vector.load %arg6[%c0_38, %c384] : memref<1x640xf32, #tpu.memory_space<vmem>>, vector<1x128xf32>
    %52 = vector.broadcast %51 : vector<1x128xf32> to vector<2x128xf32>
    %53 = arith.addf %50, %52 : vector<2x128xf32>
    %cst_39 = arith.constant 0.000000e+00 : f32
    %54 = vector.broadcast %cst_39 : f32 to vector<2x128xf32>
    %55 = arith.maximumf %53, %54 : vector<2x128xf32>
    %c0_40 = arith.constant 0 : index
    %c384_41 = arith.constant 384 : index
    %56 = vector.load %arg7[%c0_40, %c384_41] : memref<2x640xf32, #tpu.memory_space<vmem>>, vector<2x128xf32>
    tpu.vector_store %arg7[%c0_40, %c384_41], %55 {strides = array<i32>} : memref<2x640xf32, #tpu.memory_space<vmem>>, vector<2x128xf32>,
    %57 = vector.extract_strided_slice %16 {offsets = [0, 512], sizes = [2, 128], strides = [1, 1]} : vector<2x640xbf16> to vector<2x128xbf16>
    %c4 = arith.constant 4 : index
    %c0_42 = arith.constant 0 : index
    %c0_43 = arith.constant 0 : index
    %58 = vector.load %arg5[%c4, %c0_42, %c0_43] : memref<5x128x128xbf16, #tpu.memory_space<vmem>>, vector<1x128x128xbf16>
    %59 = vector.shape_cast %58 : vector<1x128x128xbf16> to vector<128x128xbf16>
    %cst_44 = arith.constant dense<0.000000e+00> : vector<2x128xf32>
    %60 = tpu.matmul %57, %59, %cst_44 {dimension_numbers = #tpu.dot_dimension_numbers<[1], [0], [0], [1], [0, 0, 1, 1], [], []>} : vector<2x128xbf16>, vector<128x128xbf16>, vector<2x128xf32> -> vector<2x128xf32>
    %c0_45 = arith.constant 0 : index
    %c512 = arith.constant 512 : index
    %61 = vector.load %arg6[%c0_45, %c512] : memref<1x640xf32, #tpu.memory_space<vmem>>, vector<1x128xf32>
    %62 = vector.broadcast %61 : vector<1x128xf32> to vector<2x128xf32>
    %63 = arith.addf %60, %62 : vector<2x128xf32>
    %cst_46 = arith.constant 0.000000e+00 : f32
    %64 = vector.broadcast %cst_46 : f32 to vector<2x128xf32>
    %65 = arith.maximumf %63, %64 : vector<2x128xf32>
    %c0_47 = arith.constant 0 : index
    %c512_48 = arith.constant 512 : index
    %66 = vector.load %arg7[%c0_47, %c512_48] : memref<2x640xf32, #tpu.memory_space<vmem>>, vector<2x128xf32>
    tpu.vector_store %arg7[%c0_47, %c512_48], %65 {strides = array<i32>} : memref<2x640xf32, #tpu.memory_space<vmem>>, vector<2x128xf32>,
    return
  }
}

</mosaic_0001>

<llo_original>
// kernel: autoencoder_forward.1
$region0: #{autoencoder_forward.1}
  #allocation0 [shape = 'u32[]', space=smem, size = 0x4, offset = 0x4, fixed_abs, tag = 'smem constant byte address 0x4 - core index']
  #allocation1 [shape = 'u32[144,128]{1,0:T(1,128)}', space=vmem, size = 0x12000, scoped, tag = 'internal scratch']
  %s0 = inlined_call_operand.vmem [shape: f32[2,80], index: 0, kind: input, shape index: {}]
  %s1 = inlined_call_operand.vmem [shape: f32[80,32], index: 1, kind: input, shape index: {}]
  %s2 = inlined_call_operand.vmem [shape: f32[1,32], index: 2, kind: input, shape index: {}]
  %s3 = inlined_call_operand.vmem [shape: bf16[32,640], index: 3, kind: input, shape index: {}]
  %s4 = inlined_call_operand.vmem [shape: f32[1,640], index: 4, kind: input, shape index: {}]
  %s5 = inlined_call_operand.hbm [shape: bf16[5,128,128], index: 5, kind: input, shape index: {}]
  %s6 = inlined_call_operand.vmem [shape: f32[1,640], index: 6, kind: input, shape index: {}]
  %s7 = inlined_call_operand.vmem [shape: f32[2,640], index: 7, kind: output, shape index: {}]
  %s8 = sld [smem:[#allocation0]]
  $region42: #{autoencoder_forward.1} parent=0
    _
  %s10 = ssub.s32 1, %s8
  %s11 = scalar_select 0, %s10, %s8
  $region1: #{autoencoder_forward.1} parent=0
    #allocation2 [shape = 'u8[163840]{0}', space=vmem, size = 0x28000, scoped, tag = 'input window, operand 5, single buffered']
    #allocation3 [shape = 's32[1]{0}', space=sflag, size = 0x4, scoped, tag = 'scoped memory for autoencoder_forward.1']
    %12 = vsyncpa [#allocation3], 0
    // Predicated region
    $region2: #{autoencoder_forward.1} parent=1 // pred_check
      _
    $region3: #{autoencoder_forward.1} parent=1 // pred_check_branch
      %14 = sbr.rel (0) target = $region5
    $region4: #{autoencoder_forward.1} parent=1 // pred_region
      _
    $region5: #{autoencoder_forward.1} parent=1 // pred_fallthru
      _
    // Predicated region
    $region6: #{autoencoder_forward.1} parent=1 // pred_check
      _
    $region7: #{autoencoder_forward.1} parent=1 // pred_check_branch
      %16 = sbr.rel (0) target = $region9
    $region8: #{autoencoder_forward.1} parent=1 // pred_region
      _
    $region9: #{autoencoder_forward.1} parent=1 // pred_fallthru
      _
    // Predicated region
    $region10: #{autoencoder_forward.1} parent=1 // pred_check
      _
    $region11: #{autoencoder_forward.1} parent=1 // pred_check_branch
      %18 = sbr.rel (0) target = $region13
    $region12: #{autoencoder_forward.1} parent=1 // pred_region
      _
    $region13: #{autoencoder_forward.1} parent=1 // pred_fallthru
      _
    // Predicated region
    $region14: #{autoencoder_forward.1} parent=1 // pred_check
      _
    $region15: #{autoencoder_forward.1} parent=1 // pred_check_branch
      %20 = sbr.rel (0) target = $region17
    $region16: #{autoencoder_forward.1} parent=1 // pred_region
      _
    $region17: #{autoencoder_forward.1} parent=1 // pred_fallthru
      _
    // Predicated region
    $region18: #{autoencoder_forward.1} parent=1 // pred_check
      _
    $region19: #{autoencoder_forward.1} parent=1 // pred_check_branch
      %22 = sbr.rel (0) target = $region21
    $region20: #{autoencoder_forward.1} parent=1 // pred_region
      _
    $region21: #{autoencoder_forward.1} parent=1 // pred_fallthru
      _
    // Predicated region
    $region22: #{autoencoder_forward.1} parent=1 // pred_check
      _
    $region23: #{autoencoder_forward.1} parent=1 // pred_check_branch
      %24 = sbr.rel (0) target = $region25
    $region24: #{autoencoder_forward.1} parent=1 // pred_region
      %s26 = ssub.s32 5120, 5120
      %27 = vsyncadd [#allocation3], %s26
      %s28 = sshll.u32 [#allocation2], 4
      %s29 = int_to_ptr.vmem [resolvable:$true] %s28
      %34 = dma.hbm_to_vmem [thread:$0]  %s5, 5120, %s29, [#allocation3], 64, 64, 4
    $region25: #{autoencoder_forward.1} parent=1 // pred_fallthru
      _
    // Predicated region
    $region26: #{autoencoder_forward.1} parent=1 // pred_check
      _
    $region27: #{autoencoder_forward.1} parent=1 // pred_check_branch
      %36 = sbr.rel (0) target = $region29
    $region28: #{autoencoder_forward.1} parent=1 // pred_region
      _
    $region29: #{autoencoder_forward.1} parent=1 // pred_fallthru
      _
    // Predicated region
    $region30: #{autoencoder_forward.1} parent=1 // pred_check
      _
    $region31: #{autoencoder_forward.1} parent=1 // pred_check_branch
      %38 = sbr.rel (0) target = $region33
    $region32: #{autoencoder_forward.1} parent=1 // pred_region
      %39 = dma.done [#allocation3], 5120
    $region33: #{autoencoder_forward.1} parent=1 // pred_fallthru
      _
    %v41 = vld [vmem:[%s0] sm:$0x3]
    %v42 = vld [vmem:[%s1] sm:$0xff]
    %v43 = vld [vmem:[%s1 + $0x8] sm:$0xff]
    %v44 = vld [vmem:[%s1 + $0x10] sm:$0xff]
    %v45 = vld [vmem:[%s1 + $0x18] sm:$0xff]
    %v46 = vld [vmem:[%s1 + $0x20] sm:$0xff]
    %v47 = vld [vmem:[%s1 + $0x28] sm:$0xff]
    %v48 = vld [vmem:[%s1 + $0x30] sm:$0xff]
    %v49 = vld [vmem:[%s1 + $0x38] sm:$0xff]
    %v50 = vld [vmem:[%s1 + $0x40] sm:$0xff]
    %v51 = vld [vmem:[%s1 + $0x48] sm:$0xff]
    %v52 = vld [vmem:[%s2] sm:$0x1]
    %v54 = vlaneseq
    %v55 = vshrl.u32 %v54, 7
    %v56 = vsub.s32 0, %v55
    %v57 = vrot.slane %v52, %v56
    %vm59 = vcmask 654336
    %v61 = vsel %vm59, %v41, 0
    %63 = vmatprep.subr.mxu0 0.0
    %64 = vmatpush1.msra.mxu0 0.0
    %65 = vmatprep.subr.mxu0 0.0
    %66 = vmatpush1.msra.mxu0 0.0
    %67 = vmatprep.subr.mxu0 0.0
    %68 = vmatpush1.msra.mxu0 0.0
    %69 = vmatprep.subr.mxu0 0.0
    %70 = vmatpush1.msra.mxu0 0.0
    %71 = vmatprep.subr.mxu0 0.0
    %72 = vmatpush1.msra.mxu0 0.0
    %73 = vmatprep.subr.mxu0 0.0
    %74 = vmatpush1.msra.mxu0 0.0
    %75 = vmatprep.subr.mxu0 0.0
    %76 = vmatpush1.msra.mxu0 %v51
    %77 = vmatprep.subr.mxu0 0.0
    %78 = vmatpush1.msra.mxu0 %v50
    %79 = vmatprep.subr.mxu0 0.0
    %80 = vmatpush1.msra.mxu0 %v49
    %81 = vmatprep.subr.mxu0 0.0
    %82 = vmatpush1.msra.mxu0 %v48
    %83 = vmatprep.subr.mxu0 0.0
    %84 = vmatpush1.msra.mxu0 %v47
    %85 = vmatprep.subr.mxu0 0.0
    %86 = vmatpush1.msra.mxu0 %v46
    %87 = vmatprep.subr.mxu0 0.0
    %88 = vmatpush1.msra.mxu0 %v45
    %89 = vmatprep.subr.mxu0 0.0
    %90 = vmatpush1.msra.mxu0 %v44
    %91 = vmatprep.subr.mxu0 0.0
    %92 = vmatpush1.msra.mxu0 %v43
    %93 = vmatprep.subr.mxu0 0.0
    %94 = vmatpush1.msra.mxu0 %v42
    %95 = vmatprep.subr.mxu0 0.0
    %96 = vmatpush2.msra.mxu0 0.0
    %97 = vmatprep.subr.mxu0 0.0
    %98 = vmatpush2.msra.mxu0 0.0
    %99 = vmatprep.subr.mxu0 0.0
    %100 = vmatpush2.msra.mxu0 0.0
    %101 = vmatprep.subr.mxu0 0.0
    %102 = vmatpush2.msra.mxu0 0.0
    %103 = vmatprep.subr.mxu0 0.0
    %104 = vmatpush2.msra.mxu0 0.0
    %105 = vmatprep.subr.mxu0 0.0
    %106 = vmatpush2.msra.mxu0 0.0
    %107 = vmatprep.subr.mxu0 0.0
    %108 = vmatpush2.msra.mxu0 0.0
    %109 = vmatprep.subr.mxu0 0.0
    %110 = vmatpush2.msra.mxu0 0.0
    %111 = vmatprep.subr.mxu0 0.0
    %112 = vmatpush2.msra.mxu0 0.0
    %113 = vmatprep.subr.mxu0 0.0
    %114 = vmatpush2.msra.mxu0 0.0
    %115 = vmatprep.subr.mxu0 0.0
    %116 = vmatpush2.msra.mxu0 0.0
    %117 = vmatprep.subr.mxu0 0.0
    %118 = vmatpush2.msra.mxu0 0.0
    %119 = vmatprep.subr.mxu0 0.0
    %120 = vmatpush2.msra.mxu0 0.0
    %121 = vmatprep.subr.mxu0 0.0
    %122 = vmatpush2.msra.mxu0 0.0
    %123 = vmatprep.subr.mxu0 0.0
    %124 = vmatpush2.msra.mxu0 0.0
    %125 = vmatprep.subr.mxu0 0.0
    %126 = vmatpush2.msra.mxu0 0.0
    %127 = vmatprep.mubr.f32.mxu0 0.0
    %128 = vmatmul.mubr.f32.gmra.mxu0 %v61
    %v129 = vpop.f32.mrf.mxu0
    %v130 = vadd.f32 %v57, %v129
    %v131 = vpop.f32.mrf.mxu0
    %132 = vdwg.mxu0
    %v133 = vmax.f32 %v130, 0.0
    %v134 = vpack.c.bf16 %v133, %v133
    %v135 = vld [vmem:[%s3] sm:$0xff]
    %v136 = vld [vmem:[%s3 + $0x8] sm:$0xff]
    %v137 = vld [vmem:[%s3 + $0x10] sm:$0xf]
    %v138 = vld [vmem:[%s3 + $0x14] sm:$0xff]
    %v139 = vld [vmem:[%s3 + $0x1c] sm:$0xff]
    %v140 = vld [vmem:[%s3 + $0x24] sm:$0xf]
    %v141 = vld [vmem:[%s3 + $0x28] sm:$0xff]
    %v142 = vld [vmem:[%s3 + $0x30] sm:$0xff]
    %v143 = vld [vmem:[%s3 + $0x38] sm:$0xf]
    %v144 = vld [vmem:[%s3 + $0x3c] sm:$0xff]
    %v145 = vld [vmem:[%s3 + $0x44] sm:$0xff]
    %v146 = vld [vmem:[%s3 + $0x4c] sm:$0xf]
    %v147 = vld [vmem:[%s4] sm:$0x1f]
    %v149 = vlaneseq
    %v150 = vshrl.u32 %v149, 7
    %v151 = vsub.s32 0, %v150
    %v152 = vrot.slane %v147, %v151
    %v153 = vlaneseq
    %v154 = vshrl.u32 %v153, 7
    %v155 = vsub.s32 1, %v154
    %v156 = vrot.slane %v147, %v155
    %v157 = vlaneseq
    %v158 = vshrl.u32 %v157, 7
    %v159 = vsub.s32 2, %v158
    %v160 = vrot.slane %v147, %v159
    %v161 = vlaneseq
    %v162 = vshrl.u32 %v161, 7
    %v163 = vsub.s32 3, %v162
    %v164 = vrot.slane %v147, %v163
    %v165 = vlaneseq
    %v166 = vshrl.u32 %v165, 7
    %v167 = vsub.s32 4, %v166
    %v168 = vrot.slane %v147, %v167
    %v186 = vunpack.c.l.b16 %v135
    %v187 = vunpack.c.h.b16 %v135
    %v188 = vunpack.c.l.b16 %v136
    %v189 = vunpack.c.h.b16 %v136
    %v190 = vunpack.c.l.b16 %v137
    %v191 = vunpack.c.l.b16 %v138
    %v192 = vunpack.c.h.b16 %v138
    %v193 = vunpack.c.l.b16 %v139
    %v194 = vunpack.c.h.b16 %v139
    %v195 = vunpack.c.l.b16 %v140
    %v196 = vunpack.c.l.b16 %v141
    %v197 = vunpack.c.h.b16 %v141
    %v198 = vunpack.c.l.b16 %v142
    %v199 = vunpack.c.h.b16 %v142
    %v200 = vunpack.c.l.b16 %v143
    %v201 = vunpack.c.l.b16 %v144
    %v202 = vunpack.c.h.b16 %v144
    %v203 = vunpack.c.l.b16 %v145
    %v204 = vunpack.c.h.b16 %v145
    %v205 = vunpack.c.l.b16 %v146
    %v206 = vpack.c.b16 %v191, %v186
    %v207 = vpack.c.b16 %v192, %v187
    %v208 = vpack.c.b16 %v193, %v188
    %v209 = vpack.c.b16 %v194, %v189
    %v210 = vpack.c.b16 %v195, %v190
    %v211 = vpack.c.b16 %v201, %v196
    %v212 = vpack.c.b16 %v202, %v197
    %v213 = vpack.c.b16 %v203, %v198
    %v214 = vpack.c.b16 %v204, %v199
    %v215 = vpack.c.b16 %v205, %v200
    %vm226 = vcmask 261120
    %v228 = vsel %vm226, %v134, 0
    %230 = vmatprep.subr.bf16.mxu0 0
    %231 = vmatpush1.bf16.msra.mxu0 0
    %232 = vmatprep.subr.bf16.mxu0 0
    %233 = vmatpush1.bf16.msra.mxu0 0
    %234 = vmatprep.subr.bf16.mxu0 0
    %235 = vmatpush1.bf16.msra.mxu0 0
    %236 = vmatprep.subr.bf16.mxu0 0
    %237 = vmatpush1.bf16.msra.mxu0 0
    %238 = vmatprep.subr.bf16.mxu0 0
    %239 = vmatpush1.bf16.msra.mxu0 0
    %240 = vmatprep.subr.bf16.mxu0 0
    %241 = vmatpush1.bf16.msra.mxu0 0
    %242 = vmatprep.subr.bf16.mxu0 %v212
    %243 = vmatpush1.bf16.msra.mxu0 %v211
    %244 = vmatprep.subr.bf16.mxu0 %v207
    %245 = vmatpush1.bf16.msra.mxu0 %v206
    %246 = vmatprep.subr.bf16.mxu0 0
    %247 = vmatpush2.bf16.msra.mxu0 0
    %248 = vmatprep.subr.bf16.mxu0 0
    %249 = vmatpush2.bf16.msra.mxu0 0
    %250 = vmatprep.subr.bf16.mxu0 0
    %251 = vmatpush2.bf16.msra.mxu0 0
    %252 = vmatprep.subr.bf16.mxu0 0
    %253 = vmatpush2.bf16.msra.mxu0 0
    %254 = vmatprep.subr.bf16.mxu0 0
    %255 = vmatpush2.bf16.msra.mxu0 0
    %256 = vmatprep.subr.bf16.mxu0 0
    %257 = vmatpush2.bf16.msra.mxu0 0
    %258 = vmatprep.subr.bf16.mxu0 0
    %259 = vmatpush2.bf16.msra.mxu0 0
    %260 = vmatprep.subr.bf16.mxu0 0
    %261 = vmatpush2.bf16.msra.mxu0 0
    %262 = vmatprep.mubr.bf16.mxu0 0
    %263 = vmatmul.mubr.bf16.gmra.mxu0 %v228
    %v264 = vpop.f32.mrf.mxu0
    %v265 = vadd.f32 %v152, %v264
    %v266 = vpop.f32.mrf.mxu0
    %v267 = vadd.f32 %v156, %v266
    %v268 = vpop.f32.mrf.mxu0
    %v269 = vpop.f32.mrf.mxu0
    %270 = vdwg.mxu0
    %271 = vmatprep.subr.bf16.mxu0 0
    %272 = vmatpush1.bf16.msra.mxu0 0
    %273 = vmatprep.subr.bf16.mxu0 0
    %274 = vmatpush1.bf16.msra.mxu0 0
    %275 = vmatprep.subr.bf16.mxu0 0
    %276 = vmatpush1.bf16.msra.mxu0 0
    %277 = vmatprep.subr.bf16.mxu0 0
    %278 = vmatpush1.bf16.msra.mxu0 0
    %279 = vmatprep.subr.bf16.mxu0 0
    %280 = vmatpush1.bf16.msra.mxu0 0
    %281 = vmatprep.subr.bf16.mxu0 0
    %282 = vmatpush1.bf16.msra.mxu0 0
    %283 = vmatprep.subr.bf16.mxu0 %v214
    %284 = vmatpush1.bf16.msra.mxu0 %v213
    %285 = vmatprep.subr.bf16.mxu0 %v209
    %286 = vmatpush1.bf16.msra.mxu0 %v208
    %287 = vmatprep.subr.bf16.mxu0 0
    %288 = vmatpush2.bf16.msra.mxu0 0
    %289 = vmatprep.subr.bf16.mxu0 0
    %290 = vmatpush2.bf16.msra.mxu0 0
    %291 = vmatprep.subr.bf16.mxu0 0
    %292 = vmatpush2.bf16.msra.mxu0 0
    %293 = vmatprep.subr.bf16.mxu0 0
    %294 = vmatpush2.bf16.msra.mxu0 0
    %295 = vmatprep.subr.bf16.mxu0 0
    %296 = vmatpush2.bf16.msra.mxu0 0
    %297 = vmatprep.subr.bf16.mxu0 0
    %298 = vmatpush2.bf16.msra.mxu0 0
    %299 = vmatprep.subr.bf16.mxu0 0
    %300 = vmatpush2.bf16.msra.mxu0 0
    %301 = vmatprep.subr.bf16.mxu0 0
    %302 = vmatpush2.bf16.msra.mxu0 0
    %303 = vmatprep.mubr.bf16.mxu0 0
    %304 = vmatmul.mubr.bf16.gmra.mxu0 %v228
    %v305 = vpop.f32.mrf.mxu0
    %v306 = vadd.f32 %v160, %v305
    %v307 = vpop.f32.mrf.mxu0
    %v308 = vadd.f32 %v164, %v307
    %v309 = vpop.f32.mrf.mxu0
    %v310 = vpop.f32.mrf.mxu0
    %311 = vdwg.mxu0
    %312 = vmatprep.subr.bf16.mxu0 0
    %313 = vmatpush1.bf16.msra.mxu0 0
    %314 = vmatprep.subr.bf16.mxu0 0
    %315 = vmatpush1.bf16.msra.mxu0 0
    %316 = vmatprep.subr.bf16.mxu0 0
    %317 = vmatpush1.bf16.msra.mxu0 0
    %318 = vmatprep.subr.bf16.mxu0 0
    %319 = vmatpush1.bf16.msra.mxu0 0
    %320 = vmatprep.subr.bf16.mxu0 0
    %321 = vmatpush1.bf16.msra.mxu0 0
    %322 = vmatprep.subr.bf16.mxu0 0
    %323 = vmatpush1.bf16.msra.mxu0 0
    %324 = vmatprep.subr.bf16.mxu0 0
    %325 = vmatpush1.bf16.msra.mxu0 %v215
    %326 = vmatprep.subr.bf16.mxu0 0
    %327 = vmatpush1.bf16.msra.mxu0 %v210
    %328 = vmatprep.subr.bf16.mxu0 0
    %329 = vmatpush2.bf16.msra.mxu0 0
    %330 = vmatprep.subr.bf16.mxu0 0
    %331 = vmatpush2.bf16.msra.mxu0 0
    %332 = vmatprep.subr.bf16.mxu0 0
    %333 = vmatpush2.bf16.msra.mxu0 0
    %334 = vmatprep.subr.bf16.mxu0 0
    %335 = vmatpush2.bf16.msra.mxu0 0
    %336 = vmatprep.subr.bf16.mxu0 0
    %337 = vmatpush2.bf16.msra.mxu0 0
    %338 = vmatprep.subr.bf16.mxu0 0
    %339 = vmatpush2.bf16.msra.mxu0 0
    %340 = vmatprep.subr.bf16.mxu0 0
    %341 = vmatpush2.bf16.msra.mxu0 0
    %342 = vmatprep.subr.bf16.mxu0 0
    %343 = vmatpush2.bf16.msra.mxu0 0
    %344 = vmatprep.mubr.bf16.mxu0 0
    %345 = vmatmul.mubr.bf16.gmra.mxu0 %v228
    %v346 = vpop.f32.mrf.mxu0
    %v347 = vadd.f32 %v168, %v346
    %v348 = vpop.f32.mrf.mxu0
    %v349 = vpop.f32.mrf.mxu0
    %v350 = vpop.f32.mrf.mxu0
    %351 = vdwg.mxu0
    %v352 = vmax.f32 %v265, 0.0
    %v353 = vmax.f32 %v267, 0.0
    %v354 = vmax.f32 %v306, 0.0
    %v355 = vmax.f32 %v308, 0.0
    %v356 = vmax.f32 %v347, 0.0
    %v357 = vpack.c.bf16 %v352, %v352
    %v358 = vpack.c.bf16 %v353, %v353
    %v359 = vpack.c.bf16 %v354, %v354
    %v360 = vpack.c.bf16 %v355, %v355
    %v361 = vpack.c.bf16 %v356, %v356
    %v362 = vld [vmem:[#allocation2] sm:$0xf]
    %v363 = vld [vmem:[#allocation2 + $0x4] sm:$0xf]
    %v364 = vld [vmem:[#allocation2 + $0x8] sm:$0xf]
    %v365 = vld [vmem:[#allocation2 + $0xc] sm:$0xf]
    %v366 = vld [vmem:[#allocation2 + $0x10] sm:$0xf]
    %v367 = vld [vmem:[#allocation2 + $0x14] sm:$0xf]
    %v368 = vld [vmem:[#allocation2 + $0x18] sm:$0xf]
    %v369 = vld [vmem:[#allocation2 + $0x1c] sm:$0xf]
    %v370 = vld [vmem:[#allocation2 + $0x20] sm:$0xf]
    %v371 = vld [vmem:[#allocation2 + $0x24] sm:$0xf]
    %v372 = vld [vmem:[#allocation2 + $0x28] sm:$0xf]
    %v373 = vld [vmem:[#allocation2 + $0x2c] sm:$0xf]
    %v374 = vld [vmem:[#allocation2 + $0x30] sm:$0xf]
    %v375 = vld [vmem:[#allocation2 + $0x34] sm:$0xf]
    %v376 = vld [vmem:[#allocation2 + $0x38] sm:$0xf]
    %v377 = vld [vmem:[#allocation2 + $0x3c] sm:$0xf]
    %v378 = vld [vmem:[%s6] sm:$0x1]
    %v380 = vlaneseq
    %v381 = vshrl.u32 %v380, 7
    %v382 = vsub.s32 0, %v381
    %v383 = vrot.slane %v378, %v382
    %v401 = vunpack.c.l.b16 %v362
    %v402 = vunpack.c.l.b16 %v363
    %v403 = vunpack.c.l.b16 %v364
    %v404 = vunpack.c.l.b16 %v365
    %v405 = vunpack.c.l.b16 %v366
    %v406 = vunpack.c.l.b16 %v367
    %v407 = vunpack.c.l.b16 %v368
    %v408 = vunpack.c.l.b16 %v369
    %v409 = vunpack.c.l.b16 %v370
    %v410 = vunpack.c.l.b16 %v371
    %v411 = vunpack.c.l.b16 %v372
    %v412 = vunpack.c.l.b16 %v373
    %v413 = vunpack.c.l.b16 %v374
    %v414 = vunpack.c.l.b16 %v375
    %v415 = vunpack.c.l.b16 %v376
    %v416 = vunpack.c.l.b16 %v377
    %v417 = vpack.c.b16 %v402, %v401
    %v418 = vpack.c.b16 %v404, %v403
    %v419 = vpack.c.b16 %v406, %v405
    %v420 = vpack.c.b16 %v408, %v407
    %v421 = vpack.c.b16 %v410, %v409
    %v422 = vpack.c.b16 %v412, %v411
    %v423 = vpack.c.b16 %v414, %v413
    %v424 = vpack.c.b16 %v416, %v415
    %433 = vmatprep.subr.bf16.mxu0 0
    %434 = vmatpush1.bf16.msra.mxu0 %v424
    %435 = vmatprep.subr.bf16.mxu0 0
    %436 = vmatpush1.bf16.msra.mxu0 %v423
    %437 = vmatprep.subr.bf16.mxu0 0
    %438 = vmatpush1.bf16.msra.mxu0 %v422
    %439 = vmatprep.subr.bf16.mxu0 0
    %440 = vmatpush1.bf16.msra.mxu0 %v421
    %441 = vmatprep.subr.bf16.mxu0 0
    %442 = vmatpush1.bf16.msra.mxu0 %v420
    %443 = vmatprep.subr.bf16.mxu0 0
    %444 = vmatpush1.bf16.msra.mxu0 %v419
    %445 = vmatprep.subr.bf16.mxu0 0
    %446 = vmatpush1.bf16.msra.mxu0 %v418
    %447 = vmatprep.subr.bf16.mxu0 0
    %448 = vmatpush1.bf16.msra.mxu0 %v417
    %449 = vmatprep.subr.bf16.mxu0 0
    %450 = vmatpush2.bf16.msra.mxu0 0
    %451 = vmatprep.subr.bf16.mxu0 0
    %452 = vmatpush2.bf16.msra.mxu0 0
    %453 = vmatprep.subr.bf16.mxu0 0
    %454 = vmatpush2.bf16.msra.mxu0 0
    %455 = vmatprep.subr.bf16.mxu0 0
    %456 = vmatpush2.bf16.msra.mxu0 0
    %457 = vmatprep.subr.bf16.mxu0 0
    %458 = vmatpush2.bf16.msra.mxu0 0
    %459 = vmatprep.subr.bf16.mxu0 0
    %460 = vmatpush2.bf16.msra.mxu0 0
    %461 = vmatprep.subr.bf16.mxu0 0
    %462 = vmatpush2.bf16.msra.mxu0 0
    %463 = vmatprep.subr.bf16.mxu0 0
    %464 = vmatpush2.bf16.msra.mxu0 0
    %465 = vmatprep.mubr.bf16.mxu0 0
    %466 = vmatmul.mubr.bf16.gmra.mxu0 %v357
    %v467 = vpop.f32.mrf.mxu0
    %v468 = vadd.f32 %v383, %v467
    %v469 = vpop.f32.mrf.mxu0
    %v470 = vpop.f32.mrf.mxu0
    %v471 = vpop.f32.mrf.mxu0
    %472 = vdwg.mxu0
    %v473 = vmax.f32 %v468, 0.0
    %474 = vst [vmem:[%s7] sm:$0x3] %v473
    %s475 = scalar_lea.vmem [#allocation2], 64
    %v476 = vld [vmem:[%s475] sm:$0xf]
    %v477 = vld [vmem:[%s475 + $0x4] sm:$0xf]
    %v478 = vld [vmem:[%s475 + $0x8] sm:$0xf]
    %v479 = vld [vmem:[%s475 + $0xc] sm:$0xf]
    %v480 = vld [vmem:[%s475 + $0x10] sm:$0xf]
    %v481 = vld [vmem:[%s475 + $0x14] sm:$0xf]
    %v482 = vld [vmem:[%s475 + $0x18] sm:$0xf]
    %v483 = vld [vmem:[%s475 + $0x1c] sm:$0xf]
    %v484 = vld [vmem:[%s475 + $0x20] sm:$0xf]
    %v485 = vld [vmem:[%s475 + $0x24] sm:$0xf]
    %v486 = vld [vmem:[%s475 + $0x28] sm:$0xf]
    %v487 = vld [vmem:[%s475 + $0x2c] sm:$0xf]
    %v488 = vld [vmem:[%s475 + $0x30] sm:$0xf]
    %v489 = vld [vmem:[%s475 + $0x34] sm:$0xf]
    %v490 = vld [vmem:[%s475 + $0x38] sm:$0xf]
    %v491 = vld [vmem:[%s475 + $0x3c] sm:$0xf]
    %v492 = vld [vmem:[%s6 + $0x1] sm:$0x1]
    %v494 = vlaneseq
    %v495 = vshrl.u32 %v494, 7
    %v496 = vsub.s32 0, %v495
    %v497 = vrot.slane %v492, %v496
    %v515 = vunpack.c.l.b16 %v476
    %v516 = vunpack.c.l.b16 %v477
    %v517 = vunpack.c.l.b16 %v478
    %v518 = vunpack.c.l.b16 %v479
    %v519 = vunpack.c.l.b16 %v480
    %v520 = vunpack.c.l.b16 %v481
    %v521 = vunpack.c.l.b16 %v482
    %v522 = vunpack.c.l.b16 %v483
    %v523 = vunpack.c.l.b16 %v484
    %v524 = vunpack.c.l.b16 %v485
    %v525 = vunpack.c.l.b16 %v486
    %v526 = vunpack.c.l.b16 %v487
    %v527 = vunpack.c.l.b16 %v488
    %v528 = vunpack.c.l.b16 %v489
    %v529 = vunpack.c.l.b16 %v490
    %v530 = vunpack.c.l.b16 %v491
    %v531 = vpack.c.b16 %v516, %v515
    %v532 = vpack.c.b16 %v518, %v517
    %v533 = vpack.c.b16 %v520, %v519
    %v534 = vpack.c.b16 %v522, %v521
    %v535 = vpack.c.b16 %v524, %v523
    %v536 = vpack.c.b16 %v526, %v525
    %v537 = vpack.c.b16 %v528, %v527
    %v538 = vpack.c.b16 %v530, %v529
    %547 = vmatprep.subr.bf16.mxu0 0
    %548 = vmatpush1.bf16.msra.mxu0 %v538
    %549 = vmatprep.subr.bf16.mxu0 0
    %550 = vmatpush1.bf16.msra.mxu0 %v537
    %551 = vmatprep.subr.bf16.mxu0 0
    %552 = vmatpush1.bf16.msra.mxu0 %v536
    %553 = vmatprep.subr.bf16.mxu0 0
    %554 = vmatpush1.bf16.msra.mxu0 %v535
    %555 = vmatprep.subr.bf16.mxu0 0
    %556 = vmatpush1.bf16.msra.mxu0 %v534
    %557 = vmatprep.subr.bf16.mxu0 0
    %558 = vmatpush1.bf16.msra.mxu0 %v533
    %559 = vmatprep.subr.bf16.mxu0 0
    %560 = vmatpush1.bf16.msra.mxu0 %v532
    %561 = vmatprep.subr.bf16.mxu0 0
    %562 = vmatpush1.bf16.msra.mxu0 %v531
    %563 = vmatprep.subr.bf16.mxu0 0
    %564 = vmatpush2.bf16.msra.mxu0 0
    %565 = vmatprep.subr.bf16.mxu0 0
    %566 = vmatpush2.bf16.msra.mxu0 0
    %567 = vmatprep.subr.bf16.mxu0 0
    %568 = vmatpush2.bf16.msra.mxu0 0
    %569 = vmatprep.subr.bf16.mxu0 0
    %570 = vmatpush2.bf16.msra.mxu0 0
    %571 = vmatprep.subr.bf16.mxu0 0
    %572 = vmatpush2.bf16.msra.mxu0 0
    %573 = vmatprep.subr.bf16.mxu0 0
    %574 = vmatpush2.bf16.msra.mxu0 0
    %575 = vmatprep.subr.bf16.mxu0 0
    %576 = vmatpush2.bf16.msra.mxu0 0
    %577 = vmatprep.subr.bf16.mxu0 0
    %578 = vmatpush2.bf16.msra.mxu0 0
    %579 = vmatprep.mubr.bf16.mxu0 0
    %580 = vmatmul.mubr.bf16.gmra.mxu0 %v358
    %v581 = vpop.f32.mrf.mxu0
    %v582 = vadd.f32 %v497, %v581
    %v583 = vpop.f32.mrf.mxu0
    %v584 = vpop.f32.mrf.mxu0
    %v585 = vpop.f32.mrf.mxu0
    %586 = vdwg.mxu0
    %v587 = vmax.f32 %v582, 0.0
    %588 = vst [vmem:[%s7 + $0x2] sm:$0x3] %v587
    %s589 = scalar_lea.vmem [#allocation2], 128
    %v590 = vld [vmem:[%s589] sm:$0xf]
    %v591 = vld [vmem:[%s589 + $0x4] sm:$0xf]
    %v592 = vld [vmem:[%s589 + $0x8] sm:$0xf]
    %v593 = vld [vmem:[%s589 + $0xc] sm:$0xf]
    %v594 = vld [vmem:[%s589 + $0x10] sm:$0xf]
    %v595 = vld [vmem:[%s589 + $0x14] sm:$0xf]
    %v596 = vld [vmem:[%s589 + $0x18] sm:$0xf]
    %v597 = vld [vmem:[%s589 + $0x1c] sm:$0xf]
    %v598 = vld [vmem:[%s589 + $0x20] sm:$0xf]
    %v599 = vld [vmem:[%s589 + $0x24] sm:$0xf]
    %v600 = vld [vmem:[%s589 + $0x28] sm:$0xf]
    %v601 = vld [vmem:[%s589 + $0x2c] sm:$0xf]
    %v602 = vld [vmem:[%s589 + $0x30] sm:$0xf]
    %v603 = vld [vmem:[%s589 + $0x34] sm:$0xf]
    %v604 = vld [vmem:[%s589 + $0x38] sm:$0xf]
    %v605 = vld [vmem:[%s589 + $0x3c] sm:$0xf]
    %v606 = vld [vmem:[%s6 + $0x2] sm:$0x1]
    %v608 = vlaneseq
    %v609 = vshrl.u32 %v608, 7
    %v610 = vsub.s32 0, %v609
    %v611 = vrot.slane %v606, %v610
    %v629 = vunpack.c.l.b16 %v590
    %v630 = vunpack.c.l.b16 %v591
    %v631 = vunpack.c.l.b16 %v592
    %v632 = vunpack.c.l.b16 %v593
    %v633 = vunpack.c.l.b16 %v594
    %v634 = vunpack.c.l.b16 %v595
    %v635 = vunpack.c.l.b16 %v596
    %v636 = vunpack.c.l.b16 %v597
    %v637 = vunpack.c.l.b16 %v598
    %v638 = vunpack.c.l.b16 %v599
    %v639 = vunpack.c.l.b16 %v600
    %v640 = vunpack.c.l.b16 %v601
    %v641 = vunpack.c.l.b16 %v602
    %v642 = vunpack.c.l.b16 %v603
    %v643 = vunpack.c.l.b16 %v604
    %v644 = vunpack.c.l.b16 %v605
    %v645 = vpack.c.b16 %v630, %v629
    %v646 = vpack.c.b16 %v632, %v631
    %v647 = vpack.c.b16 %v634, %v633
    %v648 = vpack.c.b16 %v636, %v635
    %v649 = vpack.c.b16 %v638, %v637
    %v650 = vpack.c.b16 %v640, %v639
    %v651 = vpack.c.b16 %v642, %v641
    %v652 = vpack.c.b16 %v644, %v643
    %661 = vmatprep.subr.bf16.mxu0 0
    %662 = vmatpush1.bf16.msra.mxu0 %v652
    %663 = vmatprep.subr.bf16.mxu0 0
    %664 = vmatpush1.bf16.msra.mxu0 %v651
    %665 = vmatprep.subr.bf16.mxu0 0
    %666 = vmatpush1.bf16.msra.mxu0 %v650
    %667 = vmatprep.subr.bf16.mxu0 0
    %668 = vmatpush1.bf16.msra.mxu0 %v649
    %669 = vmatprep.subr.bf16.mxu0 0
    %670 = vmatpush1.bf16.msra.mxu0 %v648
    %671 = vmatprep.subr.bf16.mxu0 0
    %672 = vmatpush1.bf16.msra.mxu0 %v647
    %673 = vmatprep.subr.bf16.mxu0 0
    %674 = vmatpush1.bf16.msra.mxu0 %v646
    %675 = vmatprep.subr.bf16.mxu0 0
    %676 = vmatpush1.bf16.msra.mxu0 %v645
    %677 = vmatprep.subr.bf16.mxu0 0
    %678 = vmatpush2.bf16.msra.mxu0 0
    %679 = vmatprep.subr.bf16.mxu0 0
    %680 = vmatpush2.bf16.msra.mxu0 0
    %681 = vmatprep.subr.bf16.mxu0 0
    %682 = vmatpush2.bf16.msra.mxu0 0
    %683 = vmatprep.subr.bf16.mxu0 0
    %684 = vmatpush2.bf16.msra.mxu0 0
    %685 = vmatprep.subr.bf16.mxu0 0
    %686 = vmatpush2.bf16.msra.mxu0 0
    %687 = vmatprep.subr.bf16.mxu0 0
    %688 = vmatpush2.bf16.msra.mxu0 0
    %689 = vmatprep.subr.bf16.mxu0 0
    %690 = vmatpush2.bf16.msra.mxu0 0
    %691 = vmatprep.subr.bf16.mxu0 0
    %692 = vmatpush2.bf16.msra.mxu0 0
    %693 = vmatprep.mubr.bf16.mxu0 0
    %694 = vmatmul.mubr.bf16.gmra.mxu0 %v359
    %v695 = vpop.f32.mrf.mxu0
    %v696 = vadd.f32 %v611, %v695
    %v697 = vpop.f32.mrf.mxu0
    %v698 = vpop.f32.mrf.mxu0
    %v699 = vpop.f32.mrf.mxu0
    %700 = vdwg.mxu0
    %v701 = vmax.f32 %v696, 0.0
    %702 = vst [vmem:[%s7 + $0x4] sm:$0x3] %v701
    %s703 = scalar_lea.vmem [#allocation2], 192
    %v704 = vld [vmem:[%s703] sm:$0xf]
    %v705 = vld [vmem:[%s703 + $0x4] sm:$0xf]
    %v706 = vld [vmem:[%s703 + $0x8] sm:$0xf]
    %v707 = vld [vmem:[%s703 + $0xc] sm:$0xf]
    %v708 = vld [vmem:[%s703 + $0x10] sm:$0xf]
    %v709 = vld [vmem:[%s703 + $0x14] sm:$0xf]
    %v710 = vld [vmem:[%s703 + $0x18] sm:$0xf]
    %v711 = vld [vmem:[%s703 + $0x1c] sm:$0xf]
    %v712 = vld [vmem:[%s703 + $0x20] sm:$0xf]
    %v713 = vld [vmem:[%s703 + $0x24] sm:$0xf]
    %v714 = vld [vmem:[%s703 + $0x28] sm:$0xf]
    %v715 = vld [vmem:[%s703 + $0x2c] sm:$0xf]
    %v716 = vld [vmem:[%s703 + $0x30] sm:$0xf]
    %v717 = vld [vmem:[%s703 + $0x34] sm:$0xf]
    %v718 = vld [vmem:[%s703 + $0x38] sm:$0xf]
    %v719 = vld [vmem:[%s703 + $0x3c] sm:$0xf]
    %v720 = vld [vmem:[%s6 + $0x3] sm:$0x1]
    %v722 = vlaneseq
    %v723 = vshrl.u32 %v722, 7
    %v724 = vsub.s32 0, %v723
    %v725 = vrot.slane %v720, %v724
    %v743 = vunpack.c.l.b16 %v704
    %v744 = vunpack.c.l.b16 %v705
    %v745 = vunpack.c.l.b16 %v706
    %v746 = vunpack.c.l.b16 %v707
    %v747 = vunpack.c.l.b16 %v708
    %v748 = vunpack.c.l.b16 %v709
    %v749 = vunpack.c.l.b16 %v710
    %v750 = vunpack.c.l.b16 %v711
    %v751 = vunpack.c.l.b16 %v712
    %v752 = vunpack.c.l.b16 %v713
    %v753 = vunpack.c.l.b16 %v714
    %v754 = vunpack.c.l.b16 %v715
    %v755 = vunpack.c.l.b16 %v716
    %v756 = vunpack.c.l.b16 %v717
    %v757 = vunpack.c.l.b16 %v718
    %v758 = vunpack.c.l.b16 %v719
    %v759 = vpack.c.b16 %v744, %v743
    %v760 = vpack.c.b16 %v746, %v745
    %v761 = vpack.c.b16 %v748, %v747
    %v762 = vpack.c.b16 %v750, %v749
    %v763 = vpack.c.b16 %v752, %v751
    %v764 = vpack.c.b16 %v754, %v753
    %v765 = vpack.c.b16 %v756, %v755
    %v766 = vpack.c.b16 %v758, %v757
    %775 = vmatprep.subr.bf16.mxu0 0
    %776 = vmatpush1.bf16.msra.mxu0 %v766
    %777 = vmatprep.subr.bf16.mxu0 0
    %778 = vmatpush1.bf16.msra.mxu0 %v765
    %779 = vmatprep.subr.bf16.mxu0 0
    %780 = vmatpush1.bf16.msra.mxu0 %v764
    %781 = vmatprep.subr.bf16.mxu0 0
    %782 = vmatpush1.bf16.msra.mxu0 %v763
    %783 = vmatprep.subr.bf16.mxu0 0
    %784 = vmatpush1.bf16.msra.mxu0 %v762
    %785 = vmatprep.subr.bf16.mxu0 0
    %786 = vmatpush1.bf16.msra.mxu0 %v761
    %787 = vmatprep.subr.bf16.mxu0 0
    %788 = vmatpush1.bf16.msra.mxu0 %v760
    %789 = vmatprep.subr.bf16.mxu0 0
    %790 = vmatpush1.bf16.msra.mxu0 %v759
    %791 = vmatprep.subr.bf16.mxu0 0
    %792 = vmatpush2.bf16.msra.mxu0 0
    %793 = vmatprep.subr.bf16.mxu0 0
    %794 = vmatpush2.bf16.msra.mxu0 0
    %795 = vmatprep.subr.bf16.mxu0 0
    %796 = vmatpush2.bf16.msra.mxu0 0
    %797 = vmatprep.subr.bf16.mxu0 0
    %798 = vmatpush2.bf16.msra.mxu0 0
    %799 = vmatprep.subr.bf16.mxu0 0
    %800 = vmatpush2.bf16.msra.mxu0 0
    %801 = vmatprep.subr.bf16.mxu0 0
    %802 = vmatpush2.bf16.msra.mxu0 0
    %803 = vmatprep.subr.bf16.mxu0 0
    %804 = vmatpush2.bf16.msra.mxu0 0
    %805 = vmatprep.subr.bf16.mxu0 0
    %806 = vmatpush2.bf16.msra.mxu0 0
    %807 = vmatprep.mubr.bf16.mxu0 0
    %808 = vmatmul.mubr.bf16.gmra.mxu0 %v360
    %v809 = vpop.f32.mrf.mxu0
    %v810 = vadd.f32 %v725, %v809
    %v811 = vpop.f32.mrf.mxu0
    %v812 = vpop.f32.mrf.mxu0
    %v813 = vpop.f32.mrf.mxu0
    %814 = vdwg.mxu0
    %v815 = vmax.f32 %v810, 0.0
    %816 = vst [vmem:[%s7 + $0x6] sm:$0x3] %v815
    %s817 = scalar_lea.vmem [#allocation2], 256
    %v818 = vld [vmem:[%s817] sm:$0xf]
    %v819 = vld [vmem:[%s817 + $0x4] sm:$0xf]
    %v820 = vld [vmem:[%s817 + $0x8] sm:$0xf]
    %v821 = vld [vmem:[%s817 + $0xc] sm:$0xf]
    %v822 = vld [vmem:[%s817 + $0x10] sm:$0xf]
    %v823 = vld [vmem:[%s817 + $0x14] sm:$0xf]
    %v824 = vld [vmem:[%s817 + $0x18] sm:$0xf]
    %v825 = vld [vmem:[%s817 + $0x1c] sm:$0xf]
    %v826 = vld [vmem:[%s817 + $0x20] sm:$0xf]
    %v827 = vld [vmem:[%s817 + $0x24] sm:$0xf]
    %v828 = vld [vmem:[%s817 + $0x28] sm:$0xf]
    %v829 = vld [vmem:[%s817 + $0x2c] sm:$0xf]
    %v830 = vld [vmem:[%s817 + $0x30] sm:$0xf]
    %v831 = vld [vmem:[%s817 + $0x34] sm:$0xf]
    %v832 = vld [vmem:[%s817 + $0x38] sm:$0xf]
    %v833 = vld [vmem:[%s817 + $0x3c] sm:$0xf]
    %v834 = vld [vmem:[%s6 + $0x4] sm:$0x1]
    %v836 = vlaneseq
    %v837 = vshrl.u32 %v836, 7
    %v838 = vsub.s32 0, %v837
    %v839 = vrot.slane %v834, %v838
    %v857 = vunpack.c.l.b16 %v818
    %v858 = vunpack.c.l.b16 %v819
    %v859 = vunpack.c.l.b16 %v820
    %v860 = vunpack.c.l.b16 %v821
    %v861 = vunpack.c.l.b16 %v822
    %v862 = vunpack.c.l.b16 %v823
    %v863 = vunpack.c.l.b16 %v824
    %v864 = vunpack.c.l.b16 %v825
    %v865 = vunpack.c.l.b16 %v826
    %v866 = vunpack.c.l.b16 %v827
    %v867 = vunpack.c.l.b16 %v828
    %v868 = vunpack.c.l.b16 %v829
    %v869 = vunpack.c.l.b16 %v830
    %v870 = vunpack.c.l.b16 %v831
    %v871 = vunpack.c.l.b16 %v832
    %v872 = vunpack.c.l.b16 %v833
    %v873 = vpack.c.b16 %v858, %v857
    %v874 = vpack.c.b16 %v860, %v859
    %v875 = vpack.c.b16 %v862, %v861
    %v876 = vpack.c.b16 %v864, %v863
    %v877 = vpack.c.b16 %v866, %v865
    %v878 = vpack.c.b16 %v868, %v867
    %v879 = vpack.c.b16 %v870, %v869
    %v880 = vpack.c.b16 %v872, %v871
    %889 = vmatprep.subr.bf16.mxu0 0
    %890 = vmatpush1.bf16.msra.mxu0 %v880
    %891 = vmatprep.subr.bf16.mxu0 0
    %892 = vmatpush1.bf16.msra.mxu0 %v879
    %893 = vmatprep.subr.bf16.mxu0 0
    %894 = vmatpush1.bf16.msra.mxu0 %v878
    %895 = vmatprep.subr.bf16.mxu0 0
    %896 = vmatpush1.bf16.msra.mxu0 %v877
    %897 = vmatprep.subr.bf16.mxu0 0
    %898 = vmatpush1.bf16.msra.mxu0 %v876
    %899 = vmatprep.subr.bf16.mxu0 0
    %900 = vmatpush1.bf16.msra.mxu0 %v875
    %901 = vmatprep.subr.bf16.mxu0 0
    %902 = vmatpush1.bf16.msra.mxu0 %v874
    %903 = vmatprep.subr.bf16.mxu0 0
    %904 = vmatpush1.bf16.msra.mxu0 %v873
    %905 = vmatprep.subr.bf16.mxu0 0
    %906 = vmatpush2.bf16.msra.mxu0 0
    %907 = vmatprep.subr.bf16.mxu0 0
    %908 = vmatpush2.bf16.msra.mxu0 0
    %909 = vmatprep.subr.bf16.mxu0 0
    %910 = vmatpush2.bf16.msra.mxu0 0
    %911 = vmatprep.subr.bf16.mxu0 0
    %912 = vmatpush2.bf16.msra.mxu0 0
    %913 = vmatprep.subr.bf16.mxu0 0
    %914 = vmatpush2.bf16.msra.mxu0 0
    %915 = vmatprep.subr.bf16.mxu0 0
    %916 = vmatpush2.bf16.msra.mxu0 0
    %917 = vmatprep.subr.bf16.mxu0 0
    %918 = vmatpush2.bf16.msra.mxu0 0
    %919 = vmatprep.subr.bf16.mxu0 0
    %920 = vmatpush2.bf16.msra.mxu0 0
    %921 = vmatprep.mubr.bf16.mxu0 0
    %922 = vmatmul.mubr.bf16.gmra.mxu0 %v361
    %v923 = vpop.f32.mrf.mxu0
    %v924 = vadd.f32 %v839, %v923
    %v925 = vpop.f32.mrf.mxu0
    %v926 = vpop.f32.mrf.mxu0
    %v927 = vpop.f32.mrf.mxu0
    %928 = vdwg.mxu0
    %v929 = vmax.f32 %v924, 0.0
    %930 = vst [vmem:[%s7 + $0x8] sm:$0x3] %v929
    // Predicated region
    $region34: #{autoencoder_forward.1} parent=1 // pred_check
      _
    $region35: #{autoencoder_forward.1} parent=1 // pred_check_branch
      %932 = sbr.rel (0) target = $region37
    $region36: #{autoencoder_forward.1} parent=1 // pred_region
      _
    $region37: #{autoencoder_forward.1} parent=1 // pred_fallthru
      _
    // Predicated region
    $region38: #{autoencoder_forward.1} parent=1 // pred_check
      _
    $region39: #{autoencoder_forward.1} parent=1 // pred_check_branch
      %934 = sbr.rel (0) target = $region41
    $region40: #{autoencoder_forward.1} parent=1 // pred_region
      _
    $region41: #{autoencoder_forward.1} parent=1 // pred_fallthru
      _
    %935 = vsyncpa [#allocation3], 1

</llo_original>
